<compile_context>
chip_gen: v6e
topology: v6e:2x2x1
jax: 0.10.0
libtpu: 0.0.40
codegen_flags: <defaults>
</compile_context>

<pallas_src>
import functools

import jax
import jax.numpy as jnp
from jax.experimental import pallas as pl
from jax.experimental.pallas import tpu as pltpu


def _r8(n):
    return ((n + 7) // 8) * 8


def _r128(n):
    return ((n + 127) // 128) * 128


def _pack_offsets(action_dim, hidden_dim, out_dim):
    """Static, sublane-aligned row offsets inside the packed weight buffers."""
    o_we1 = 0
    o_we2 = o_we1 + _r8(out_dim)
    o_wih = o_we2 + _r8(hidden_dim)
    o_whh = o_wih + _r8(action_dim)
    o_wd1 = o_whh + _r8(hidden_dim)
    o_bias = o_wd1 + _r8(hidden_dim)
    o_bd2 = _r8(hidden_dim)          # in the decoder-output buffer
    return o_we1, o_we2, o_wih, o_whh, o_wd1, o_bias, o_bd2


# ------------------------------ fused DRNN kernel ------------------------------
def _drnn_kernel(x_ref, a2d_ref, wbuf_ref, dbuf_ref, out_ref, *,
                 seq, batch, action_dim, hidden_dim, out_dim,
                 o_we1, o_we2, o_wih, o_whh, o_wd1, o_bias, o_bd2):
    f32 = jnp.float32
    H = hidden_dim

    # ---- carve parameters out of the two packed VMEM buffers (static slices) --
    we1 = wbuf_ref[o_we1:o_we1 + out_dim, :]      # [O, H]
    we2 = wbuf_ref[o_we2:o_we2 + H, :]            # [H, H]
    wih = wbuf_ref[o_wih:o_wih + action_dim, :]   # [A, H]
    whh = wbuf_ref[o_whh:o_whh + H, :]            # [H, H]
    wd1 = wbuf_ref[o_wd1:o_wd1 + H, :]            # [H, H]
    be1 = wbuf_ref[o_bias + 0:o_bias + 1, :]      # [1, H]
    be2 = wbuf_ref[o_bias + 1:o_bias + 2, :]
    brec = wbuf_ref[o_bias + 2:o_bias + 3, :]     # = b_ih + b_hh
    bd1 = wbuf_ref[o_bias + 3:o_bias + 4, :]
    wd2 = dbuf_ref[0:H, :]                        # [H, Opad]  (lane-dense, zero-padded cols)
    bd2 = dbuf_ref[o_bd2:o_bd2 + 1, :]            # [1, Opad]

    # ---- init encoder: h0 = tanh(relu(x @ We1 + be1) @ We2 + be2) --------------
    x = x_ref[...]                                                       # [B, O]
    e = jnp.maximum(jnp.dot(x, we1, preferred_element_type=f32) + be1, 0.0)
    h = jnp.tanh(jnp.dot(e, we2, preferred_element_type=f32) + be2)      # [B, H]

    # ---- hoisted input projection for ALL timesteps (one matmul) ---------------
    # rows t*B:(t+1)*B of x_proj == actions[t] @ W_ih^T + (b_ih + b_hh)
    x_proj = jnp.dot(a2d_ref[...], wih, preferred_element_type=f32) + brec  # [S*B, H]

    # ---- serial tanh-RNN recurrence; hidden states stay in vregs ---------------
    h_list = []
    for t in range(seq):  # static trip count -> fully unrolled straight-line code
        pre = x_proj[t * batch:(t + 1) * batch, :] + jnp.dot(
            h, whh, preferred_element_type=f32)
        h = jnp.tanh(pre)
        h_list.append(h)
    h_all = jnp.concatenate(h_list, axis=0)                              # [S*B, H]

    # ---- deferred decoder on all steps at once: Linear -> ReLU -> Linear -------
    d = jnp.maximum(jnp.dot(h_all, wd1, preferred_element_type=f32) + bd1, 0.0)
    # [S*B, Opad] with Opad a multiple of 128 -> unmasked lane-dense stores.
    out_ref[...] = jnp.dot(d, wd2, preferred_element_type=f32) + bd2


@functools.partial(jax.jit, static_argnames=("action_dim", "hidden_dim", "out_dim"))
def _drnn_forward(init_x, actions, wbuf, dbuf, *, action_dim, hidden_dim, out_dim):
    S, B, A = actions.shape
    Opad = dbuf.shape[1]
    actions_2d = actions.reshape(S * B, A)   # time-major flatten (free under jit)

    o_we1, o_we2, o_wih, o_whh, o_wd1, o_bias, o_bd2 = _pack_offsets(
        action_dim, hidden_dim, out_dim)

    kernel = functools.partial(
        _drnn_kernel, seq=S, batch=B,
        action_dim=action_dim, hidden_dim=hidden_dim, out_dim=out_dim,
        o_we1=o_we1, o_we2=o_we2, o_wih=o_wih, o_whh=o_whh,
        o_wd1=o_wd1, o_bias=o_bias, o_bd2=o_bd2)

    out2d = pl.pallas_call(
        kernel,
        out_shape=jax.ShapeDtypeStruct((S * B, Opad), jnp.float32),
        # whole problem fits in VMEM; no grid -> single invocation, no pipeline overhead
        compiler_params=pltpu.CompilerParams(vmem_limit_bytes=32 * 1024 * 1024),
    )(init_x, actions_2d, wbuf, dbuf)

    return out2d[:, :out_dim].reshape(S, B, out_dim)


# --------------------------------- DRNN wrapper --------------------------------
class DRNNPallas:
    def __init__(self, action_dim, hidden_dim, output_dim, key, mode="RNN"):
        assert mode == "RNN", "only mode='RNN' implemented"
        self.mode = mode
        self.action_dim = action_dim
        self.hidden_dim = hidden_dim
        self.output_dim = output_dim
        ks = jax.random.split(key, 12)
        f32 = jnp.float32
        sc = 0.1
        # NOTE: all weights are stored PRE-TRANSPOSED as [in_dim, out_dim]
        # so the kernel never transposes (no in-kernel relayout per call).
        # init_encoder: Linear(output->hidden), ReLU, Linear(hidden->hidden), Tanh
        self.we1 = (sc * jax.random.normal(ks[0], (output_dim, hidden_dim))).astype(f32)
        self.be1 = (sc * jax.random.normal(ks[1], (1, hidden_dim))).astype(f32)
        self.we2 = (sc * jax.random.normal(ks[2], (hidden_dim, hidden_dim))).astype(f32)
        self.be2 = (sc * jax.random.normal(ks[3], (1, hidden_dim))).astype(f32)
        # nn.RNN(action_dim, hidden_dim) parameters
        self.w_ih = (sc * jax.random.normal(ks[4], (action_dim, hidden_dim))).astype(f32)
        self.b_ih = (sc * jax.random.normal(ks[5], (1, hidden_dim))).astype(f32)
        self.w_hh = (sc * jax.random.normal(ks[6], (hidden_dim, hidden_dim))).astype(f32)
        self.b_hh = (sc * jax.random.normal(ks[7], (1, hidden_dim))).astype(f32)
        self.b_rec = self.b_ih + self.b_hh        # pre-summed recurrent bias
        # decoder: Linear(hidden->hidden), ReLU, Linear(hidden->output)
        self.wd1 = (sc * jax.random.normal(ks[8], (hidden_dim, hidden_dim))).astype(f32)
        self.bd1 = (sc * jax.random.normal(ks[9], (1, hidden_dim))).astype(f32)
        self.wd2 = (sc * jax.random.normal(ks[10], (hidden_dim, output_dim))).astype(f32)
        self.bd2 = (sc * jax.random.normal(ks[11], (1, output_dim))).astype(f32)

        # ---- pack everything into two flat buffers (two bulk DMAs per call) ----
        def pad_rows(a, rows):
            return jnp.pad(a, ((0, rows - a.shape[0]), (0, 0)))

        H, O, A = hidden_dim, output_dim, action_dim
        bias_block = jnp.concatenate([self.be1, self.be2, self.b_rec, self.bd1], axis=0)
        self.wbuf = jnp.concatenate([
            pad_rows(self.we1, _r8(O)),
            pad_rows(self.we2, _r8(H)),
            pad_rows(self.w_ih, _r8(A)),
            pad_rows(self.w_hh, _r8(H)),
            pad_rows(self.wd1, _r8(H)),
            pad_rows(bias_block, 8),
        ], axis=0).astype(f32)                                  # [rows, H]

        Opad = _r128(O)   # lane-dense output: pad output_dim up to a multiple of 128
        wd2p = jnp.pad(self.wd2, ((0, _r8(H) - H), (0, Opad - O)))
        bd2p = jnp.pad(self.bd2, ((0, 8 - 1), (0, Opad - O)))
        self.dbuf = jnp.concatenate([wd2p, bd2p], axis=0).astype(f32)   # [rows, Opad]

    def forward(self, init_x, actions):
        """init_x: [batch, output_dim], actions: [seq, batch, action_dim]
        Returns [seq, batch, output_dim] (== concat of the PyTorch output_list)."""
        return _drnn_forward(init_x, actions, self.wbuf, self.dbuf,
                             action_dim=self.action_dim,
                             hidden_dim=self.hidden_dim,
                             out_dim=self.output_dim)

    # pure-JAX reference for verification
    def forward_ref(self, init_x, actions):
        h = jnp.tanh(jnp.maximum(init_x @ self.we1 + self.be1, 0.0) @ self.we2 + self.be2)
        outs = []
        for t in range(actions.shape[0]):
            h = jnp.tanh(actions[t] @ self.w_ih + self.b_ih + h @ self.w_hh + self.b_hh)
            d = jnp.maximum(h @ self.wd1 + self.bd1, 0.0) @ self.wd2 + self.bd2
            outs.append(d[None])
        return jnp.concatenate(outs, axis=0)


if __name__ == "__main__":
    key = jax.random.PRNGKey(0)
    k_param, k_x, k_a = jax.random.split(key, 3)

    batch, seq = 8, 8
    action_dim, hidden_dim, output_dim = 4, 32, 4

    model = DRNNPallas(action_dim, hidden_dim, output_dim, k_param, mode="RNN")

    init_x = jax.random.normal(k_x, (batch, output_dim), dtype=jnp.float32)
    actions = jax.random.normal(k_a, (seq, batch, action_dim), dtype=jnp.float32)

    out = model.forward(init_x, actions)
    jax.block_until_ready(out)

    ref = model.forward_ref(init_x, actions)
    assert out.shape == (seq, batch, output_dim)
    assert jnp.allclose(out, ref, atol=1e-4, rtol=1e-4), "mismatch vs pure-JAX reference"

    print("KERNEL_OK")
</pallas_src>

<mosaic_0001>
module attributes {stable_mosaic.version = 11 : i64} {
  func.func @_drnn_kernel(%arg0: memref<8x4xf32, #tpu.memory_space<vmem>>, %arg1: memref<64x4xf32, #tpu.memory_space<vmem>>, %arg2: memref<120x32xf32, #tpu.memory_space<vmem>>, %arg3: memref<40x128xf32, #tpu.memory_space<vmem>>, %arg4: memref<64x128xf32, #tpu.memory_space<vmem>>) attributes {dimension_semantics = [], scalar_prefetch = 0 : i64, scratch_operands = 0 : i64, tpu.core_type = #tpu.core_type<tc>} {
    %c0 = arith.constant 0 : index
    %c0_0 = arith.constant 0 : index
    %0 = vector.load %arg2[%c0, %c0_0] : memref<120x32xf32, #tpu.memory_space<vmem>>, vector<4x32xf32>
    %c8 = arith.constant 8 : index
    %c0_1 = arith.constant 0 : index
    %1 = vector.load %arg2[%c8, %c0_1] : memref<120x32xf32, #tpu.memory_space<vmem>>, vector<32x32xf32>
    %c40 = arith.constant 40 : index
    %c0_2 = arith.constant 0 : index
    %2 = vector.load %arg2[%c40, %c0_2] : memref<120x32xf32, #tpu.memory_space<vmem>>, vector<4x32xf32>
    %c48 = arith.constant 48 : index
    %c0_3 = arith.constant 0 : index
    %3 = vector.load %arg2[%c48, %c0_3] : memref<120x32xf32, #tpu.memory_space<vmem>>, vector<32x32xf32>
    %c80 = arith.constant 80 : index
    %c0_4 = arith.constant 0 : index
    %4 = vector.load %arg2[%c80, %c0_4] : memref<120x32xf32, #tpu.memory_space<vmem>>, vector<32x32xf32>
    %c112 = arith.constant 112 : index
    %c0_5 = arith.constant 0 : index
    %5 = vector.load %arg2[%c112, %c0_5] : memref<120x32xf32, #tpu.memory_space<vmem>>, vector<1x32xf32>
    %c113 = arith.constant 113 : index
    %c0_6 = arith.constant 0 : index
    %6 = vector.load %arg2[%c113, %c0_6] : memref<120x32xf32, #tpu.memory_space<vmem>>, vector<1x32xf32>
    %c114 = arith.constant 114 : index
    %c0_7 = arith.constant 0 : index
    %7 = vector.load %arg2[%c114, %c0_7] : memref<120x32xf32, #tpu.memory_space<vmem>>, vector<1x32xf32>
    %c115 = arith.constant 115 : index
    %c0_8 = arith.constant 0 : index
    %8 = vector.load %arg2[%c115, %c0_8] : memref<120x32xf32, #tpu.memory_space<vmem>>, vector<1x32xf32>
    %c0_9 = arith.constant 0 : index
    %c0_10 = arith.constant 0 : index
    %9 = vector.load %arg3[%c0_9, %c0_10] : memref<40x128xf32, #tpu.memory_space<vmem>>, vector<32x128xf32>
    %c32 = arith.constant 32 : index
    %c0_11 = arith.constant 0 : index
    %10 = vector.load %arg3[%c32, %c0_11] : memref<40x128xf32, #tpu.memory_space<vmem>>, vector<1x128xf32>
    %c0_12 = arith.constant 0 : index
    %c0_13 = arith.constant 0 : index
    %11 = vector.load %arg0[%c0_12, %c0_13] : memref<8x4xf32, #tpu.memory_space<vmem>>, vector<8x4xf32>
    %cst = arith.constant dense<0.000000e+00> : vector<8x32xf32>
    %12 = tpu.matmul %11, %0, %cst {dimension_numbers = #tpu.dot_dimension_numbers<[1], [0], [0], [1], [0, 0, 1, 1], [], []>} : vector<8x4xf32>, vector<4x32xf32>, vector<8x32xf32> -> vector<8x32xf32>
    %13 = vector.broadcast %5 : vector<1x32xf32> to vector<8x32xf32>
    %14 = arith.addf %12, %13 : vector<8x32xf32>
    %cst_14 = arith.constant 0.000000e+00 : f32
    %15 = vector.broadcast %cst_14 : f32 to vector<8x32xf32>
    %16 = arith.maximumf %14, %15 : vector<8x32xf32>
    %cst_15 = arith.constant dense<0.000000e+00> : vector<8x32xf32>
    %17 = tpu.matmul %16, %1, %cst_15 {dimension_numbers = #tpu.dot_dimension_numbers<[1], [0], [0], [1], [0, 0, 1, 1], [], []>} : vector<8x32xf32>, vector<32x32xf32>, vector<8x32xf32> -> vector<8x32xf32>
    %18 = vector.broadcast %6 : vector<1x32xf32> to vector<8x32xf32>
    %19 = arith.addf %17, %18 : vector<8x32xf32>
    %20 = math.tanh %19 : vector<8x32xf32>
    %c0_16 = arith.constant 0 : index
    %c0_17 = arith.constant 0 : index
    %21 = vector.load %arg1[%c0_16, %c0_17] : memref<64x4xf32, #tpu.memory_space<vmem>>, vector<64x4xf32>
    %cst_18 = arith.constant dense<0.000000e+00> : vector<64x32xf32>
    %22 = tpu.matmul %21, %2, %cst_18 {dimension_numbers = #tpu.dot_dimension_numbers<[1], [0], [0], [1], [0, 0, 1, 1], [], []>} : vector<64x4xf32>, vector<4x32xf32>, vector<64x32xf32> -> vector<64x32xf32>
    %23 = vector.broadcast %7 : vector<1x32xf32> to vector<64x32xf32>
    %24 = arith.addf %22, %23 : vector<64x32xf32>
    %25 = vector.extract_strided_slice %24 {offsets = [0, 0], sizes = [8, 32], strides = [1, 1]} : vector<64x32xf32> to vector<8x32xf32>
    %cst_19 = arith.constant dense<0.000000e+00> : vector<8x32xf32>
    %26 = tpu.matmul %20, %3, %cst_19 {dimension_numbers = #tpu.dot_dimension_numbers<[1], [0], [0], [1], [0, 0, 1, 1], [], []>} : vector<8x32xf32>, vector<32x32xf32>, vector<8x32xf32> -> vector<8x32xf32>
    %27 = arith.addf %25, %26 : vector<8x32xf32>
    %28 = math.tanh %27 : vector<8x32xf32>
    %29 = vector.extract_strided_slice %24 {offsets = [8, 0], sizes = [8, 32], strides = [1, 1]} : vector<64x32xf32> to vector<8x32xf32>
    %cst_20 = arith.constant dense<0.000000e+00> : vector<8x32xf32>
    %30 = tpu.matmul %28, %3, %cst_20 {dimension_numbers = #tpu.dot_dimension_numbers<[1], [0], [0], [1], [0, 0, 1, 1], [], []>} : vector<8x32xf32>, vector<32x32xf32>, vector<8x32xf32> -> vector<8x32xf32>
    %31 = arith.addf %29, %30 : vector<8x32xf32>
    %32 = math.tanh %31 : vector<8x32xf32>
    %33 = vector.extract_strided_slice %24 {offsets = [16, 0], sizes = [8, 32], strides = [1, 1]} : vector<64x32xf32> to vector<8x32xf32>
    %cst_21 = arith.constant dense<0.000000e+00> : vector<8x32xf32>
    %34 = tpu.matmul %32, %3, %cst_21 {dimension_numbers = #tpu.dot_dimension_numbers<[1], [0], [0], [1], [0, 0, 1, 1], [], []>} : vector<8x32xf32>, vector<32x32xf32>, vector<8x32xf32> -> vector<8x32xf32>
    %35 = arith.addf %33, %34 : vector<8x32xf32>
    %36 = math.tanh %35 : vector<8x32xf32>
    %37 = vector.extract_strided_slice %24 {offsets = [24, 0], sizes = [8, 32], strides = [1, 1]} : vector<64x32xf32> to vector<8x32xf32>
    %cst_22 = arith.constant dense<0.000000e+00> : vector<8x32xf32>
    %38 = tpu.matmul %36, %3, %cst_22 {dimension_numbers = #tpu.dot_dimension_numbers<[1], [0], [0], [1], [0, 0, 1, 1], [], []>} : vector<8x32xf32>, vector<32x32xf32>, vector<8x32xf32> -> vector<8x32xf32>
    %39 = arith.addf %37, %38 : vector<8x32xf32>
    %40 = math.tanh %39 : vector<8x32xf32>
    %41 = vector.extract_strided_slice %24 {offsets = [32, 0], sizes = [8, 32], strides = [1, 1]} : vector<64x32xf32> to vector<8x32xf32>
    %cst_23 = arith.constant dense<0.000000e+00> : vector<8x32xf32>
    %42 = tpu.matmul %40, %3, %cst_23 {dimension_numbers = #tpu.dot_dimension_numbers<[1], [0], [0], [1], [0, 0, 1, 1], [], []>} : vector<8x32xf32>, vector<32x32xf32>, vector<8x32xf32> -> vector<8x32xf32>
    %43 = arith.addf %41, %42 : vector<8x32xf32>
    %44 = math.tanh %43 : vector<8x32xf32>
    %45 = vector.extract_strided_slice %24 {offsets = [40, 0], sizes = [8, 32], strides = [1, 1]} : vector<64x32xf32> to vector<8x32xf32>
    %cst_24 = arith.constant dense<0.000000e+00> : vector<8x32xf32>
    %46 = tpu.matmul %44, %3, %cst_24 {dimension_numbers = #tpu.dot_dimension_numbers<[1], [0], [0], [1], [0, 0, 1, 1], [], []>} : vector<8x32xf32>, vector<32x32xf32>, vector<8x32xf32> -> vector<8x32xf32>
    %47 = arith.addf %45, %46 : vector<8x32xf32>
    %48 = math.tanh %47 : vector<8x32xf32>
    %49 = vector.extract_strided_slice %24 {offsets = [48, 0], sizes = [8, 32], strides = [1, 1]} : vector<64x32xf32> to vector<8x32xf32>
    %cst_25 = arith.constant dense<0.000000e+00> : vector<8x32xf32>
    %50 = tpu.matmul %48, %3, %cst_25 {dimension_numbers = #tpu.dot_dimension_numbers<[1], [0], [0], [1], [0, 0, 1, 1], [], []>} : vector<8x32xf32>, vector<32x32xf32>, vector<8x32xf32> -> vector<8x32xf32>
    %51 = arith.addf %49, %50 : vector<8x32xf32>
    %52 = math.tanh %51 : vector<8x32xf32>
    %53 = vector.extract_strided_slice %24 {offsets = [56, 0], sizes = [8, 32], strides = [1, 1]} : vector<64x32xf32> to vector<8x32xf32>
    %cst_26 = arith.constant dense<0.000000e+00> : vector<8x32xf32>
    %54 = tpu.matmul %52, %3, %cst_26 {dimension_numbers = #tpu.dot_dimension_numbers<[1], [0], [0], [1], [0, 0, 1, 1], [], []>} : vector<8x32xf32>, vector<32x32xf32>, vector<8x32xf32> -> vector<8x32xf32>
    %55 = arith.addf %53, %54 : vector<8x32xf32>
    %56 = math.tanh %55 : vector<8x32xf32>
    %57 = tpu.concatenate %28, %32, %36, %40, %44, %48, %52, %56 in 0 : vector<8x32xf32>, vector<8x32xf32>, vector<8x32xf32>, vector<8x32xf32>, vector<8x32xf32>, vector<8x32xf32>, vector<8x32xf32>, vector<8x32xf32> -> vector<64x32xf32>
    %cst_27 = arith.constant dense<0.000000e+00> : vector<64x32xf32>
    %58 = tpu.matmul %57, %4, %cst_27 {dimension_numbers = #tpu.dot_dimension_numbers<[1], [0], [0], [1], [0, 0, 1, 1], [], []>} : vector<64x32xf32>, vector<32x32xf32>, vector<64x32xf32> -> vector<64x32xf32>
    %59 = vector.broadcast %8 : vector<1x32xf32> to vector<64x32xf32>
    %60 = arith.addf %58, %59 : vector<64x32xf32>
    %cst_28 = arith.constant 0.000000e+00 : f32
    %61 = vector.broadcast %cst_28 : f32 to vector<64x32xf32>
    %62 = arith.maximumf %60, %61 : vector<64x32xf32>
    %cst_29 = arith.constant dense<0.000000e+00> : vector<64x128xf32>
    %63 = tpu.matmul %62, %9, %cst_29 {dimension_numbers = #tpu.dot_dimension_numbers<[1], [0], [0], [1], [0, 0, 1, 1], [], []>} : vector<64x32xf32>, vector<32x128xf32>, vector<64x128xf32> -> vector<64x128xf32>
    %64 = vector.broadcast %10 : vector<1x128xf32> to vector<64x128xf32>
    %65 = arith.addf %63, %64 : vector<64x128xf32>
    %c0_30 = arith.constant 0 : index
    %c0_31 = arith.constant 0 : index
    %66 = vector.load %arg4[%c0_30, %c0_31] : memref<64x128xf32, #tpu.memory_space<vmem>>, vector<64x128xf32>
    tpu.vector_store %arg4[%c0_30, %c0_31], %65 {strides = array<i32>} : memref<64x128xf32, #tpu.memory_space<vmem>>, vector<64x128xf32>,
    return
  }
}

</mosaic_0001>

<llo_original>
// kernel: _drnn_forward.1
$region0: #{_drnn_forward.1}
  #allocation0 [shape = 'u32[]', space=smem, size = 0x4, offset = 0x4, fixed_abs, tag = 'smem constant byte address 0x4 - core index']
  #allocation1 [shape = 'u32[144,128]{1,0:T(1,128)}', space=vmem, size = 0x12000, scoped, tag = 'internal scratch']
  %s0 = inlined_call_operand.vmem [shape: f32[8,4], index: 0, kind: input, shape index: {}]
  %s1 = inlined_call_operand.vmem [shape: f32[64,4], index: 1, kind: input, shape index: {}]
  %s2 = inlined_call_operand.vmem [shape: f32[120,32], index: 2, kind: input, shape index: {}]
  %s3 = inlined_call_operand.vmem [shape: f32[40,128], index: 3, kind: input, shape index: {}]
  %s4 = inlined_call_operand.vmem [shape: f32[64,128], index: 4, kind: output, shape index: {}]
  %s5 = sld [smem:[#allocation0]]
  $region26: #{_drnn_forward.1} parent=0
    _
  %s7 = ssub.s32 1, %s5
  %s8 = scalar_select 0, %s7, %s5
  // Predicated region
  $region2: #{_drnn_forward.1} parent=0 // pred_check
    _
  $region3: #{_drnn_forward.1} parent=0 // pred_check_branch
    %10 = sbr.rel (0) target = $region5
  $region4: #{_drnn_forward.1} parent=0 // pred_region
    _
  $region5: #{_drnn_forward.1} parent=0 // pred_fallthru
    _
  // Predicated region
  $region6: #{_drnn_forward.1} parent=0 // pred_check
    _
  $region7: #{_drnn_forward.1} parent=0 // pred_check_branch
    %12 = sbr.rel (0) target = $region9
  $region8: #{_drnn_forward.1} parent=0 // pred_region
    _
  $region9: #{_drnn_forward.1} parent=0 // pred_fallthru
    _
  // Predicated region
  $region10: #{_drnn_forward.1} parent=0 // pred_check
    _
  $region11: #{_drnn_forward.1} parent=0 // pred_check_branch
    %14 = sbr.rel (0) target = $region13
  $region12: #{_drnn_forward.1} parent=0 // pred_region
    _
  $region13: #{_drnn_forward.1} parent=0 // pred_fallthru
    _
  // Predicated region
  $region14: #{_drnn_forward.1} parent=0 // pred_check
    _
  $region15: #{_drnn_forward.1} parent=0 // pred_check_branch
    %16 = sbr.rel (0) target = $region17
  $region16: #{_drnn_forward.1} parent=0 // pred_region
    _
  $region17: #{_drnn_forward.1} parent=0 // pred_fallthru
    _
  %v17 = vld [vmem:[%s2] sm:$0xf]
  %v18 = vld [vmem:[%s2 + $0x8] sm:$0xff]
  %v19 = vld [vmem:[%s2 + $0x10] sm:$0xff]
  %v20 = vld [vmem:[%s2 + $0x18] sm:$0xff]
  %v21 = vld [vmem:[%s2 + $0x20] sm:$0xff]
  %v22 = vld [vmem:[%s2 + $0x28] sm:$0xf]
  %v23 = vld [vmem:[%s2 + $0x30] sm:$0xff]
  %v24 = vld [vmem:[%s2 + $0x38] sm:$0xff]
  %v25 = vld [vmem:[%s2 + $0x40] sm:$0xff]
  %v26 = vld [vmem:[%s2 + $0x48] sm:$0xff]
  %v27 = vld [vmem:[%s2 + $0x50] sm:$0xff]
  %v28 = vld [vmem:[%s2 + $0x58] sm:$0xff]
  %v29 = vld [vmem:[%s2 + $0x60] sm:$0xff]
  %v30 = vld [vmem:[%s2 + $0x68] sm:$0xff]
  %v31 = vld [vmem:[%s2 + $0x70] sm:$0x1]
  %v32 = vld [vmem:[%s2 + $0x71] sm:$0x1]
  %v33 = vld [vmem:[%s2 + $0x72] sm:$0x1]
  %v34 = vld [vmem:[%s2 + $0x73] sm:$0x1]
  %v35 = vld [vmem:[%s3] sm:$0xff]
  %v36 = vld [vmem:[%s3 + $0x8] sm:$0xff]
  %v37 = vld [vmem:[%s3 + $0x10] sm:$0xff]
  %v38 = vld [vmem:[%s3 + $0x18] sm:$0xff]
  %v39 = vld [vmem:[%s3 + $0x20] sm:$0x1]
  %v40 = vld [vmem:[%s0] sm:$0xff]
  %v41 = vlaneseq
  %v42 = vshrl.u32 %v41, 7
  %v43 = vsub.s32 0, %v42
  %v44 = vrot.slane %v31, %v43
  %vm45 = vcmask 31744
  %v47 = vsel %vm45, %v40, 0
  %vm49 = vcmask 1043456
  %v51 = vsel %vm49, %v17, 0
  %53 = vmatprep.subr.mxu0 0.0
  %54 = vmatpush1.msra.mxu0 0.0
  %55 = vmatprep.subr.mxu0 0.0
  %56 = vmatpush1.msra.mxu0 0.0
  %57 = vmatprep.subr.mxu0 0.0
  %58 = vmatpush1.msra.mxu0 0.0
  %59 = vmatprep.subr.mxu0 0.0
  %60 = vmatpush1.msra.mxu0 0.0
  %61 = vmatprep.subr.mxu0 0.0
  %62 = vmatpush1.msra.mxu0 0.0
  %63 = vmatprep.subr.mxu0 0.0
  %64 = vmatpush1.msra.mxu0 0.0
  %65 = vmatprep.subr.mxu0 0.0
  %66 = vmatpush1.msra.mxu0 0.0
  %67 = vmatprep.subr.mxu0 0.0
  %68 = vmatpush1.msra.mxu0 0.0
  %69 = vmatprep.subr.mxu0 0.0
  %70 = vmatpush1.msra.mxu0 0.0
  %71 = vmatprep.subr.mxu0 0.0
  %72 = vmatpush1.msra.mxu0 0.0
  %73 = vmatprep.subr.mxu0 0.0
  %74 = vmatpush1.msra.mxu0 0.0
  %75 = vmatprep.subr.mxu0 0.0
  %76 = vmatpush1.msra.mxu0 0.0
  %77 = vmatprep.subr.mxu0 0.0
  %78 = vmatpush1.msra.mxu0 0.0
  %79 = vmatprep.subr.mxu0 0.0
  %80 = vmatpush1.msra.mxu0 0.0
  %81 = vmatprep.subr.mxu0 0.0
  %82 = vmatpush1.msra.mxu0 0.0
  %83 = vmatprep.subr.mxu0 0.0
  %84 = vmatpush1.msra.mxu0 %v51
  %85 = vmatprep.subr.mxu0 0.0
  %86 = vmatpush2.msra.mxu0 0.0
  %87 = vmatprep.subr.mxu0 0.0
  %88 = vmatpush2.msra.mxu0 0.0
  %89 = vmatprep.subr.mxu0 0.0
  %90 = vmatpush2.msra.mxu0 0.0
  %91 = vmatprep.subr.mxu0 0.0
  %92 = vmatpush2.msra.mxu0 0.0
  %93 = vmatprep.subr.mxu0 0.0
  %94 = vmatpush2.msra.mxu0 0.0
  %95 = vmatprep.subr.mxu0 0.0
  %96 = vmatpush2.msra.mxu0 0.0
  %97 = vmatprep.subr.mxu0 0.0
  %98 = vmatpush2.msra.mxu0 0.0
  %99 = vmatprep.subr.mxu0 0.0
  %100 = vmatpush2.msra.mxu0 0.0
  %101 = vmatprep.subr.mxu0 0.0
  %102 = vmatpush2.msra.mxu0 0.0
  %103 = vmatprep.subr.mxu0 0.0
  %104 = vmatpush2.msra.mxu0 0.0
  %105 = vmatprep.subr.mxu0 0.0
  %106 = vmatpush2.msra.mxu0 0.0
  %107 = vmatprep.subr.mxu0 0.0
  %108 = vmatpush2.msra.mxu0 0.0
  %109 = vmatprep.subr.mxu0 0.0
  %110 = vmatpush2.msra.mxu0 0.0
  %111 = vmatprep.subr.mxu0 0.0
  %112 = vmatpush2.msra.mxu0 0.0
  %113 = vmatprep.subr.mxu0 0.0
  %114 = vmatpush2.msra.mxu0 0.0
  %115 = vmatprep.subr.mxu0 0.0
  %116 = vmatpush2.msra.mxu0 0.0
  %117 = vmatprep.mubr.f32.mxu0 0.0
  %118 = vmatmul.mubr.f32.gmra.mxu0 %v47
  %v119 = vpop.f32.mrf.mxu0
  %v120 = vadd.f32 %v44, %v119
  %v121 = vpop.f32.mrf.mxu0
  %122 = vdwg.mxu0
  %v123 = vmax.f32 %v120, 0.0
  %v124 = vlaneseq
  %v125 = vshrl.u32 %v124, 7
  %v126 = vsub.s32 0, %v125
  %v127 = vrot.slane %v32, %v126
  %vm128 = vcmask 261120
  %v130 = vsel %vm128, %v123, 0
  %132 = vmatprep.subr.mxu0 0.0
  %133 = vmatpush1.msra.mxu0 0.0
  %134 = vmatprep.subr.mxu0 0.0
  %135 = vmatpush1.msra.mxu0 0.0
  %136 = vmatprep.subr.mxu0 0.0
  %137 = vmatpush1.msra.mxu0 0.0
  %138 = vmatprep.subr.mxu0 0.0
  %139 = vmatpush1.msra.mxu0 0.0
  %140 = vmatprep.subr.mxu0 0.0
  %141 = vmatpush1.msra.mxu0 0.0
  %142 = vmatprep.subr.mxu0 0.0
  %143 = vmatpush1.msra.mxu0 0.0
  %144 = vmatprep.subr.mxu0 0.0
  %145 = vmatpush1.msra.mxu0 0.0
  %146 = vmatprep.subr.mxu0 0.0
  %147 = vmatpush1.msra.mxu0 0.0
  %148 = vmatprep.subr.mxu0 0.0
  %149 = vmatpush1.msra.mxu0 0.0
  %150 = vmatprep.subr.mxu0 0.0
  %151 = vmatpush1.msra.mxu0 0.0
  %152 = vmatprep.subr.mxu0 0.0
  %153 = vmatpush1.msra.mxu0 0.0
  %154 = vmatprep.subr.mxu0 0.0
  %155 = vmatpush1.msra.mxu0 0.0
  %156 = vmatprep.subr.mxu0 0.0
  %157 = vmatpush1.msra.mxu0 %v21
  %158 = vmatprep.subr.mxu0 0.0
  %159 = vmatpush1.msra.mxu0 %v20
  %160 = vmatprep.subr.mxu0 0.0
  %161 = vmatpush1.msra.mxu0 %v19
  %162 = vmatprep.subr.mxu0 0.0
  %163 = vmatpush1.msra.mxu0 %v18
  %164 = vmatprep.subr.mxu0 0.0
  %165 = vmatpush2.msra.mxu0 0.0
  %166 = vmatprep.subr.mxu0 0.0
  %167 = vmatpush2.msra.mxu0 0.0
  %168 = vmatprep.subr.mxu0 0.0
  %169 = vmatpush2.msra.mxu0 0.0
  %170 = vmatprep.subr.mxu0 0.0
  %171 = vmatpush2.msra.mxu0 0.0
  %172 = vmatprep.subr.mxu0 0.0
  %173 = vmatpush2.msra.mxu0 0.0
  %174 = vmatprep.subr.mxu0 0.0
  %175 = vmatpush2.msra.mxu0 0.0
  %176 = vmatprep.subr.mxu0 0.0
  %177 = vmatpush2.msra.mxu0 0.0
  %178 = vmatprep.subr.mxu0 0.0
  %179 = vmatpush2.msra.mxu0 0.0
  %180 = vmatprep.subr.mxu0 0.0
  %181 = vmatpush2.msra.mxu0 0.0
  %182 = vmatprep.subr.mxu0 0.0
  %183 = vmatpush2.msra.mxu0 0.0
  %184 = vmatprep.subr.mxu0 0.0
  %185 = vmatpush2.msra.mxu0 0.0
  %186 = vmatprep.subr.mxu0 0.0
  %187 = vmatpush2.msra.mxu0 0.0
  %188 = vmatprep.subr.mxu0 0.0
  %189 = vmatpush2.msra.mxu0 0.0
  %190 = vmatprep.subr.mxu0 0.0
  %191 = vmatpush2.msra.mxu0 0.0
  %192 = vmatprep.subr.mxu0 0.0
  %193 = vmatpush2.msra.mxu0 0.0
  %194 = vmatprep.subr.mxu0 0.0
  %195 = vmatpush2.msra.mxu0 0.0
  %196 = vmatprep.mubr.f32.mxu0 0.0
  %197 = vmatmul.mubr.f32.gmra.mxu0 %v130
  %v198 = vpop.f32.mrf.mxu0
  %v199 = vadd.f32 %v127, %v198
  %v200 = vpop.f32.mrf.mxu0
  %201 = vdwg.mxu0
  %v202 = vtanh.pop %v199
  %v203 = vld [vmem:[%s1] sm:$0xff]
  %v204 = vld [vmem:[%s1 + $0x8] sm:$0xff]
  %v205 = vld [vmem:[%s1 + $0x10] sm:$0xff]
  %v206 = vld [vmem:[%s1 + $0x18] sm:$0xff]
  %v207 = vld [vmem:[%s1 + $0x20] sm:$0xff]
  %v208 = vld [vmem:[%s1 + $0x28] sm:$0xff]
  %v209 = vld [vmem:[%s1 + $0x30] sm:$0xff]
  %v210 = vld [vmem:[%s1 + $0x38] sm:$0xff]
  %v211 = vlaneseq
  %v212 = vshrl.u32 %v211, 7
  %v213 = vsub.s32 0, %v212
  %v214 = vrot.slane %v33, %v213
  %v216 = vsel %vm45, %v203, 0
  %v219 = vsel %vm45, %v204, 0
  %v222 = vsel %vm45, %v205, 0
  %v225 = vsel %vm45, %v206, 0
  %v228 = vsel %vm45, %v207, 0
  %v231 = vsel %vm45, %v208, 0
  %v234 = vsel %vm45, %v209, 0
  %v237 = vsel %vm45, %v210, 0
  %v240 = vsel %vm49, %v22, 0
  %242 = vmatprep.subr.mxu0 0.0
  %243 = vmatpush1.msra.mxu0 0.0
  %244 = vmatprep.subr.mxu0 0.0
  %245 = vmatpush1.msra.mxu0 0.0
  %246 = vmatprep.subr.mxu0 0.0
  %247 = vmatpush1.msra.mxu0 0.0
  %248 = vmatprep.subr.mxu0 0.0
  %249 = vmatpush1.msra.mxu0 0.0
  %250 = vmatprep.subr.mxu0 0.0
  %251 = vmatpush1.msra.mxu0 0.0
  %252 = vmatprep.subr.mxu0 0.0
  %253 = vmatpush1.msra.mxu0 0.0
  %254 = vmatprep.subr.mxu0 0.0
  %255 = vmatpush1.msra.mxu0 0.0
  %256 = vmatprep.subr.mxu0 0.0
  %257 = vmatpush1.msra.mxu0 0.0
  %258 = vmatprep.subr.mxu0 0.0
  %259 = vmatpush1.msra.mxu0 0.0
  %260 = vmatprep.subr.mxu0 0.0
  %261 = vmatpush1.msra.mxu0 0.0
  %262 = vmatprep.subr.mxu0 0.0
  %263 = vmatpush1.msra.mxu0 0.0
  %264 = vmatprep.subr.mxu0 0.0
  %265 = vmatpush1.msra.mxu0 0.0
  %266 = vmatprep.subr.mxu0 0.0
  %267 = vmatpush1.msra.mxu0 0.0
  %268 = vmatprep.subr.mxu0 0.0
  %269 = vmatpush1.msra.mxu0 0.0
  %270 = vmatprep.subr.mxu0 0.0
  %271 = vmatpush1.msra.mxu0 0.0
  %272 = vmatprep.subr.mxu0 0.0
  %273 = vmatpush1.msra.mxu0 %v240
  %274 = vmatprep.subr.mxu0 0.0
  %275 = vmatpush2.msra.mxu0 0.0
  %276 = vmatprep.subr.mxu0 0.0
  %277 = vmatpush2.msra.mxu0 0.0
  %278 = vmatprep.subr.mxu0 0.0
  %279 = vmatpush2.msra.mxu0 0.0
  %280 = vmatprep.subr.mxu0 0.0
  %281 = vmatpush2.msra.mxu0 0.0
  %282 = vmatprep.subr.mxu0 0.0
  %283 = vmatpush2.msra.mxu0 0.0
  %284 = vmatprep.subr.mxu0 0.0
  %285 = vmatpush2.msra.mxu0 0.0
  %286 = vmatprep.subr.mxu0 0.0
  %287 = vmatpush2.msra.mxu0 0.0
  %288 = vmatprep.subr.mxu0 0.0
  %289 = vmatpush2.msra.mxu0 0.0
  %290 = vmatprep.subr.mxu0 0.0
  %291 = vmatpush2.msra.mxu0 0.0
  %292 = vmatprep.subr.mxu0 0.0
  %293 = vmatpush2.msra.mxu0 0.0
  %294 = vmatprep.subr.mxu0 0.0
  %295 = vmatpush2.msra.mxu0 0.0
  %296 = vmatprep.subr.mxu0 0.0
  %297 = vmatpush2.msra.mxu0 0.0
  %298 = vmatprep.subr.mxu0 0.0
  %299 = vmatpush2.msra.mxu0 0.0
  %300 = vmatprep.subr.mxu0 0.0
  %301 = vmatpush2.msra.mxu0 0.0
  %302 = vmatprep.subr.mxu0 0.0
  %303 = vmatpush2.msra.mxu0 0.0
  %304 = vmatprep.subr.mxu0 0.0
  %305 = vmatpush2.msra.mxu0 0.0
  %306 = vmatprep.mubr.f32.mxu0 0.0
  %307 = vmatmul.mubr.f32.gmra.mxu0 %v216
  %v308 = vpop.f32.mrf.mxu0
  %v309 = vadd.f32 %v214, %v308
  %v310 = vpop.f32.mrf.mxu0
  %311 = vmatprep.mubr.f32.mxu0 0.0
  %312 = vmatmul.mubr.f32.gmra.mxu0 %v219
  %v313 = vpop.f32.mrf.mxu0
  %v314 = vadd.f32 %v214, %v313
  %v315 = vpop.f32.mrf.mxu0
  %316 = vmatprep.mubr.f32.mxu0 0.0
  %317 = vmatmul.mubr.f32.gmra.mxu0 %v222
  %v318 = vpop.f32.mrf.mxu0
  %v319 = vadd.f32 %v214, %v318
  %v320 = vpop.f32.mrf.mxu0
  %321 = vmatprep.mubr.f32.mxu0 0.0
  %322 = vmatmul.mubr.f32.gmra.mxu0 %v225
  %v323 = vpop.f32.mrf.mxu0
  %v324 = vadd.f32 %v214, %v323
  %v325 = vpop.f32.mrf.mxu0
  %326 = vmatprep.mubr.f32.mxu0 0.0
  %327 = vmatmul.mubr.f32.gmra.mxu0 %v228
  %v328 = vpop.f32.mrf.mxu0
  %v329 = vadd.f32 %v214, %v328
  %v330 = vpop.f32.mrf.mxu0
  %331 = vmatprep.mubr.f32.mxu0 0.0
  %332 = vmatmul.mubr.f32.gmra.mxu0 %v231
  %v333 = vpop.f32.mrf.mxu0
  %v334 = vadd.f32 %v214, %v333
  %v335 = vpop.f32.mrf.mxu0
  %336 = vmatprep.mubr.f32.mxu0 0.0
  %337 = vmatmul.mubr.f32.gmra.mxu0 %v234
  %v338 = vpop.f32.mrf.mxu0
  %v339 = vadd.f32 %v214, %v338
  %v340 = vpop.f32.mrf.mxu0
  %341 = vmatprep.mubr.f32.mxu0 0.0
  %342 = vmatmul.mubr.f32.gmra.mxu0 %v237
  %v343 = vpop.f32.mrf.mxu0
  %v344 = vadd.f32 %v214, %v343
  %v345 = vpop.f32.mrf.mxu0
  %346 = vdwg.mxu0
  %v348 = vsel %vm128, %v202, 0
  %350 = vmatprep.subr.mxu0 0.0
  %351 = vmatpush1.msra.mxu0 0.0
  %352 = vmatprep.subr.mxu0 0.0
  %353 = vmatpush1.msra.mxu0 0.0
  %354 = vmatprep.subr.mxu0 0.0
  %355 = vmatpush1.msra.mxu0 0.0
  %356 = vmatprep.subr.mxu0 0.0
  %357 = vmatpush1.msra.mxu0 0.0
  %358 = vmatprep.subr.mxu0 0.0
  %359 = vmatpush1.msra.mxu0 0.0
  %360 = vmatprep.subr.mxu0 0.0
  %361 = vmatpush1.msra.mxu0 0.0
  %362 = vmatprep.subr.mxu0 0.0
  %363 = vmatpush1.msra.mxu0 0.0
  %364 = vmatprep.subr.mxu0 0.0
  %365 = vmatpush1.msra.mxu0 0.0
  %366 = vmatprep.subr.mxu0 0.0
  %367 = vmatpush1.msra.mxu0 0.0
  %368 = vmatprep.subr.mxu0 0.0
  %369 = vmatpush1.msra.mxu0 0.0
  %370 = vmatprep.subr.mxu0 0.0
  %371 = vmatpush1.msra.mxu0 0.0
  %372 = vmatprep.subr.mxu0 0.0
  %373 = vmatpush1.msra.mxu0 0.0
  %374 = vmatprep.subr.mxu0 0.0
  %375 = vmatpush1.msra.mxu0 %v26
  %376 = vmatprep.subr.mxu0 0.0
  %377 = vmatpush1.msra.mxu0 %v25
  %378 = vmatprep.subr.mxu0 0.0
  %379 = vmatpush1.msra.mxu0 %v24
  %380 = vmatprep.subr.mxu0 0.0
  %381 = vmatpush1.msra.mxu0 %v23
  %382 = vmatprep.subr.mxu0 0.0
  %383 = vmatpush2.msra.mxu0 0.0
  %384 = vmatprep.subr.mxu0 0.0
  %385 = vmatpush2.msra.mxu0 0.0
  %386 = vmatprep.subr.mxu0 0.0
  %387 = vmatpush2.msra.mxu0 0.0
  %388 = vmatprep.subr.mxu0 0.0
  %389 = vmatpush2.msra.mxu0 0.0
  %390 = vmatprep.subr.mxu0 0.0
  %391 = vmatpush2.msra.mxu0 0.0
  %392 = vmatprep.subr.mxu0 0.0
  %393 = vmatpush2.msra.mxu0 0.0
  %394 = vmatprep.subr.mxu0 0.0
  %395 = vmatpush2.msra.mxu0 0.0
  %396 = vmatprep.subr.mxu0 0.0
  %397 = vmatpush2.msra.mxu0 0.0
  %398 = vmatprep.subr.mxu0 0.0
  %399 = vmatpush2.msra.mxu0 0.0
  %400 = vmatprep.subr.mxu0 0.0
  %401 = vmatpush2.msra.mxu0 0.0
  %402 = vmatprep.subr.mxu0 0.0
  %403 = vmatpush2.msra.mxu0 0.0
  %404 = vmatprep.subr.mxu0 0.0
  %405 = vmatpush2.msra.mxu0 0.0
  %406 = vmatprep.subr.mxu0 0.0
  %407 = vmatpush2.msra.mxu0 0.0
  %408 = vmatprep.subr.mxu0 0.0
  %409 = vmatpush2.msra.mxu0 0.0
  %410 = vmatprep.subr.mxu0 0.0
  %411 = vmatpush2.msra.mxu0 0.0
  %412 = vmatprep.subr.mxu0 0.0
  %413 = vmatpush2.msra.mxu0 0.0
  %414 = vmatprep.mubr.f32.mxu0 0.0
  %415 = vmatmul.mubr.f32.gmra.mxu0 %v348
  %v416 = vpop.f32.mrf.mxu0
  %v417 = vadd.f32 0.0, %v416
  %v418 = vpop.f32.mrf.mxu0
  %419 = vdwg.mxu0
  %v420 = vadd.f32 %v309, %v417
  %v421 = vtanh.pop %v420
  %v423 = vsel %vm128, %v421, 0
  %425 = vmatprep.subr.mxu0 0.0
  %426 = vmatpush1.msra.mxu0 0.0
  %427 = vmatprep.subr.mxu0 0.0
  %428 = vmatpush1.msra.mxu0 0.0
  %429 = vmatprep.subr.mxu0 0.0
  %430 = vmatpush1.msra.mxu0 0.0
  %431 = vmatprep.subr.mxu0 0.0
  %432 = vmatpush1.msra.mxu0 0.0
  %433 = vmatprep.subr.mxu0 0.0
  %434 = vmatpush1.msra.mxu0 0.0
  %435 = vmatprep.subr.mxu0 0.0
  %436 = vmatpush1.msra.mxu0 0.0
  %437 = vmatprep.subr.mxu0 0.0
  %438 = vmatpush1.msra.mxu0 0.0
  %439 = vmatprep.subr.mxu0 0.0
  %440 = vmatpush1.msra.mxu0 0.0
  %441 = vmatprep.subr.mxu0 0.0
  %442 = vmatpush1.msra.mxu0 0.0
  %443 = vmatprep.subr.mxu0 0.0
  %444 = vmatpush1.msra.mxu0 0.0
  %445 = vmatprep.subr.mxu0 0.0
  %446 = vmatpush1.msra.mxu0 0.0
  %447 = vmatprep.subr.mxu0 0.0
  %448 = vmatpush1.msra.mxu0 0.0
  %449 = vmatprep.subr.mxu0 0.0
  %450 = vmatpush1.msra.mxu0 %v26
  %451 = vmatprep.subr.mxu0 0.0
  %452 = vmatpush1.msra.mxu0 %v25
  %453 = vmatprep.subr.mxu0 0.0
  %454 = vmatpush1.msra.mxu0 %v24
  %455 = vmatprep.subr.mxu0 0.0
  %456 = vmatpush1.msra.mxu0 %v23
  %457 = vmatprep.subr.mxu0 0.0
  %458 = vmatpush2.msra.mxu0 0.0
  %459 = vmatprep.subr.mxu0 0.0
  %460 = vmatpush2.msra.mxu0 0.0
  %461 = vmatprep.subr.mxu0 0.0
  %462 = vmatpush2.msra.mxu0 0.0
  %463 = vmatprep.subr.mxu0 0.0
  %464 = vmatpush2.msra.mxu0 0.0
  %465 = vmatprep.subr.mxu0 0.0
  %466 = vmatpush2.msra.mxu0 0.0
  %467 = vmatprep.subr.mxu0 0.0
  %468 = vmatpush2.msra.mxu0 0.0
  %469 = vmatprep.subr.mxu0 0.0
  %470 = vmatpush2.msra.mxu0 0.0
  %471 = vmatprep.subr.mxu0 0.0
  %472 = vmatpush2.msra.mxu0 0.0
  %473 = vmatprep.subr.mxu0 0.0
  %474 = vmatpush2.msra.mxu0 0.0
  %475 = vmatprep.subr.mxu0 0.0
  %476 = vmatpush2.msra.mxu0 0.0
  %477 = vmatprep.subr.mxu0 0.0
  %478 = vmatpush2.msra.mxu0 0.0
  %479 = vmatprep.subr.mxu0 0.0
  %480 = vmatpush2.msra.mxu0 0.0
  %481 = vmatprep.subr.mxu0 0.0
  %482 = vmatpush2.msra.mxu0 0.0
  %483 = vmatprep.subr.mxu0 0.0
  %484 = vmatpush2.msra.mxu0 0.0
  %485 = vmatprep.subr.mxu0 0.0
  %486 = vmatpush2.msra.mxu0 0.0
  %487 = vmatprep.subr.mxu0 0.0
  %488 = vmatpush2.msra.mxu0 0.0
  %489 = vmatprep.mubr.f32.mxu0 0.0
  %490 = vmatmul.mubr.f32.gmra.mxu0 %v423
  %v491 = vpop.f32.mrf.mxu0
  %v492 = vadd.f32 0.0, %v491
  %v493 = vpop.f32.mrf.mxu0
  %494 = vdwg.mxu0
  %v495 = vadd.f32 %v314, %v492
  %v496 = vtanh.pop %v495
  %v498 = vsel %vm128, %v496, 0
  %500 = vmatprep.subr.mxu0 0.0
  %501 = vmatpush1.msra.mxu0 0.0
  %502 = vmatprep.subr.mxu0 0.0
  %503 = vmatpush1.msra.mxu0 0.0
  %504 = vmatprep.subr.mxu0 0.0
  %505 = vmatpush1.msra.mxu0 0.0
  %506 = vmatprep.subr.mxu0 0.0
  %507 = vmatpush1.msra.mxu0 0.0
  %508 = vmatprep.subr.mxu0 0.0
  %509 = vmatpush1.msra.mxu0 0.0
  %510 = vmatprep.subr.mxu0 0.0
  %511 = vmatpush1.msra.mxu0 0.0
  %512 = vmatprep.subr.mxu0 0.0
  %513 = vmatpush1.msra.mxu0 0.0
  %514 = vmatprep.subr.mxu0 0.0
  %515 = vmatpush1.msra.mxu0 0.0
  %516 = vmatprep.subr.mxu0 0.0
  %517 = vmatpush1.msra.mxu0 0.0
  %518 = vmatprep.subr.mxu0 0.0
  %519 = vmatpush1.msra.mxu0 0.0
  %520 = vmatprep.subr.mxu0 0.0
  %521 = vmatpush1.msra.mxu0 0.0
  %522 = vmatprep.subr.mxu0 0.0
  %523 = vmatpush1.msra.mxu0 0.0
  %524 = vmatprep.subr.mxu0 0.0
  %525 = vmatpush1.msra.mxu0 %v26
  %526 = vmatprep.subr.mxu0 0.0
  %527 = vmatpush1.msra.mxu0 %v25
  %528 = vmatprep.subr.mxu0 0.0
  %529 = vmatpush1.msra.mxu0 %v24
  %530 = vmatprep.subr.mxu0 0.0
  %531 = vmatpush1.msra.mxu0 %v23
  %532 = vmatprep.subr.mxu0 0.0
  %533 = vmatpush2.msra.mxu0 0.0
  %534 = vmatprep.subr.mxu0 0.0
  %535 = vmatpush2.msra.mxu0 0.0
  %536 = vmatprep.subr.mxu0 0.0
  %537 = vmatpush2.msra.mxu0 0.0
  %538 = vmatprep.subr.mxu0 0.0
  %539 = vmatpush2.msra.mxu0 0.0
  %540 = vmatprep.subr.mxu0 0.0
  %541 = vmatpush2.msra.mxu0 0.0
  %542 = vmatprep.subr.mxu0 0.0
  %543 = vmatpush2.msra.mxu0 0.0
  %544 = vmatprep.subr.mxu0 0.0
  %545 = vmatpush2.msra.mxu0 0.0
  %546 = vmatprep.subr.mxu0 0.0
  %547 = vmatpush2.msra.mxu0 0.0
  %548 = vmatprep.subr.mxu0 0.0
  %549 = vmatpush2.msra.mxu0 0.0
  %550 = vmatprep.subr.mxu0 0.0
  %551 = vmatpush2.msra.mxu0 0.0
  %552 = vmatprep.subr.mxu0 0.0
  %553 = vmatpush2.msra.mxu0 0.0
  %554 = vmatprep.subr.mxu0 0.0
  %555 = vmatpush2.msra.mxu0 0.0
  %556 = vmatprep.subr.mxu0 0.0
  %557 = vmatpush2.msra.mxu0 0.0
  %558 = vmatprep.subr.mxu0 0.0
  %559 = vmatpush2.msra.mxu0 0.0
  %560 = vmatprep.subr.mxu0 0.0
  %561 = vmatpush2.msra.mxu0 0.0
  %562 = vmatprep.subr.mxu0 0.0
  %563 = vmatpush2.msra.mxu0 0.0
  %564 = vmatprep.mubr.f32.mxu0 0.0
  %565 = vmatmul.mubr.f32.gmra.mxu0 %v498
  %v566 = vpop.f32.mrf.mxu0
  %v567 = vadd.f32 0.0, %v566
  %v568 = vpop.f32.mrf.mxu0
  %569 = vdwg.mxu0
  %v570 = vadd.f32 %v319, %v567
  %v571 = vtanh.pop %v570
  %v573 = vsel %vm128, %v571, 0
  %575 = vmatprep.subr.mxu0 0.0
  %576 = vmatpush1.msra.mxu0 0.0
  %577 = vmatprep.subr.mxu0 0.0
  %578 = vmatpush1.msra.mxu0 0.0
  %579 = vmatprep.subr.mxu0 0.0
  %580 = vmatpush1.msra.mxu0 0.0
  %581 = vmatprep.subr.mxu0 0.0
  %582 = vmatpush1.msra.mxu0 0.0
  %583 = vmatprep.subr.mxu0 0.0
  %584 = vmatpush1.msra.mxu0 0.0
  %585 = vmatprep.subr.mxu0 0.0
  %586 = vmatpush1.msra.mxu0 0.0
  %587 = vmatprep.subr.mxu0 0.0
  %588 = vmatpush1.msra.mxu0 0.0
  %589 = vmatprep.subr.mxu0 0.0
  %590 = vmatpush1.msra.mxu0 0.0
  %591 = vmatprep.subr.mxu0 0.0
  %592 = vmatpush1.msra.mxu0 0.0
  %593 = vmatprep.subr.mxu0 0.0
  %594 = vmatpush1.msra.mxu0 0.0
  %595 = vmatprep.subr.mxu0 0.0
  %596 = vmatpush1.msra.mxu0 0.0
  %597 = vmatprep.subr.mxu0 0.0
  %598 = vmatpush1.msra.mxu0 0.0
  %599 = vmatprep.subr.mxu0 0.0
  %600 = vmatpush1.msra.mxu0 %v26
  %601 = vmatprep.subr.mxu0 0.0
  %602 = vmatpush1.msra.mxu0 %v25
  %603 = vmatprep.subr.mxu0 0.0
  %604 = vmatpush1.msra.mxu0 %v24
  %605 = vmatprep.subr.mxu0 0.0
  %606 = vmatpush1.msra.mxu0 %v23
  %607 = vmatprep.subr.mxu0 0.0
  %608 = vmatpush2.msra.mxu0 0.0
  %609 = vmatprep.subr.mxu0 0.0
  %610 = vmatpush2.msra.mxu0 0.0
  %611 = vmatprep.subr.mxu0 0.0
  %612 = vmatpush2.msra.mxu0 0.0
  %613 = vmatprep.subr.mxu0 0.0
  %614 = vmatpush2.msra.mxu0 0.0
  %615 = vmatprep.subr.mxu0 0.0
  %616 = vmatpush2.msra.mxu0 0.0
  %617 = vmatprep.subr.mxu0 0.0
  %618 = vmatpush2.msra.mxu0 0.0
  %619 = vmatprep.subr.mxu0 0.0
  %620 = vmatpush2.msra.mxu0 0.0
  %621 = vmatprep.subr.mxu0 0.0
  %622 = vmatpush2.msra.mxu0 0.0
  %623 = vmatprep.subr.mxu0 0.0
  %624 = vmatpush2.msra.mxu0 0.0
  %625 = vmatprep.subr.mxu0 0.0
  %626 = vmatpush2.msra.mxu0 0.0
  %627 = vmatprep.subr.mxu0 0.0
  %628 = vmatpush2.msra.mxu0 0.0
  %629 = vmatprep.subr.mxu0 0.0
  %630 = vmatpush2.msra.mxu0 0.0
  %631 = vmatprep.subr.mxu0 0.0
  %632 = vmatpush2.msra.mxu0 0.0
  %633 = vmatprep.subr.mxu0 0.0
  %634 = vmatpush2.msra.mxu0 0.0
  %635 = vmatprep.subr.mxu0 0.0
  %636 = vmatpush2.msra.mxu0 0.0
  %637 = vmatprep.subr.mxu0 0.0
  %638 = vmatpush2.msra.mxu0 0.0
  %639 = vmatprep.mubr.f32.mxu0 0.0
  %640 = vmatmul.mubr.f32.gmra.mxu0 %v573
  %v641 = vpop.f32.mrf.mxu0
  %v642 = vadd.f32 0.0, %v641
  %v643 = vpop.f32.mrf.mxu0
  %644 = vdwg.mxu0
  %v645 = vadd.f32 %v324, %v642
  %v646 = vtanh.pop %v645
  %v648 = vsel %vm128, %v646, 0
  %650 = vmatprep.subr.mxu0 0.0
  %651 = vmatpush1.msra.mxu0 0.0
  %652 = vmatprep.subr.mxu0 0.0
  %653 = vmatpush1.msra.mxu0 0.0
  %654 = vmatprep.subr.mxu0 0.0
  %655 = vmatpush1.msra.mxu0 0.0
  %656 = vmatprep.subr.mxu0 0.0
  %657 = vmatpush1.msra.mxu0 0.0
  %658 = vmatprep.subr.mxu0 0.0
  %659 = vmatpush1.msra.mxu0 0.0
  %660 = vmatprep.subr.mxu0 0.0
  %661 = vmatpush1.msra.mxu0 0.0
  %662 = vmatprep.subr.mxu0 0.0
  %663 = vmatpush1.msra.mxu0 0.0
  %664 = vmatprep.subr.mxu0 0.0
  %665 = vmatpush1.msra.mxu0 0.0
  %666 = vmatprep.subr.mxu0 0.0
  %667 = vmatpush1.msra.mxu0 0.0
  %668 = vmatprep.subr.mxu0 0.0
  %669 = vmatpush1.msra.mxu0 0.0
  %670 = vmatprep.subr.mxu0 0.0
  %671 = vmatpush1.msra.mxu0 0.0
  %672 = vmatprep.subr.mxu0 0.0
  %673 = vmatpush1.msra.mxu0 0.0
  %674 = vmatprep.subr.mxu0 0.0
  %675 = vmatpush1.msra.mxu0 %v26
  %676 = vmatprep.subr.mxu0 0.0
  %677 = vmatpush1.msra.mxu0 %v25
  %678 = vmatprep.subr.mxu0 0.0
  %679 = vmatpush1.msra.mxu0 %v24
  %680 = vmatprep.subr.mxu0 0.0
  %681 = vmatpush1.msra.mxu0 %v23
  %682 = vmatprep.subr.mxu0 0.0
  %683 = vmatpush2.msra.mxu0 0.0
  %684 = vmatprep.subr.mxu0 0.0
  %685 = vmatpush2.msra.mxu0 0.0
  %686 = vmatprep.subr.mxu0 0.0
  %687 = vmatpush2.msra.mxu0 0.0
  %688 = vmatprep.subr.mxu0 0.0
  %689 = vmatpush2.msra.mxu0 0.0
  %690 = vmatprep.subr.mxu0 0.0
  %691 = vmatpush2.msra.mxu0 0.0
  %692 = vmatprep.subr.mxu0 0.0
  %693 = vmatpush2.msra.mxu0 0.0
  %694 = vmatprep.subr.mxu0 0.0
  %695 = vmatpush2.msra.mxu0 0.0
  %696 = vmatprep.subr.mxu0 0.0
  %697 = vmatpush2.msra.mxu0 0.0
  %698 = vmatprep.subr.mxu0 0.0
  %699 = vmatpush2.msra.mxu0 0.0
  %700 = vmatprep.subr.mxu0 0.0
  %701 = vmatpush2.msra.mxu0 0.0
  %702 = vmatprep.subr.mxu0 0.0
  %703 = vmatpush2.msra.mxu0 0.0
  %704 = vmatprep.subr.mxu0 0.0
  %705 = vmatpush2.msra.mxu0 0.0
  %706 = vmatprep.subr.mxu0 0.0
  %707 = vmatpush2.msra.mxu0 0.0
  %708 = vmatprep.subr.mxu0 0.0
  %709 = vmatpush2.msra.mxu0 0.0
  %710 = vmatprep.subr.mxu0 0.0
  %711 = vmatpush2.msra.mxu0 0.0
  %712 = vmatprep.subr.mxu0 0.0
  %713 = vmatpush2.msra.mxu0 0.0
  %714 = vmatprep.mubr.f32.mxu0 0.0
  %715 = vmatmul.mubr.f32.gmra.mxu0 %v648
  %v716 = vpop.f32.mrf.mxu0
  %v717 = vadd.f32 0.0, %v716
  %v718 = vpop.f32.mrf.mxu0
  %719 = vdwg.mxu0
  %v720 = vadd.f32 %v329, %v717
  %v721 = vtanh.pop %v720
  %v723 = vsel %vm128, %v721, 0
  %725 = vmatprep.subr.mxu0 0.0
  %726 = vmatpush1.msra.mxu0 0.0
  %727 = vmatprep.subr.mxu0 0.0
  %728 = vmatpush1.msra.mxu0 0.0
  %729 = vmatprep.subr.mxu0 0.0
  %730 = vmatpush1.msra.mxu0 0.0
  %731 = vmatprep.subr.mxu0 0.0
  %732 = vmatpush1.msra.mxu0 0.0
  %733 = vmatprep.subr.mxu0 0.0
  %734 = vmatpush1.msra.mxu0 0.0
  %735 = vmatprep.subr.mxu0 0.0
  %736 = vmatpush1.msra.mxu0 0.0
  %737 = vmatprep.subr.mxu0 0.0
  %738 = vmatpush1.msra.mxu0 0.0
  %739 = vmatprep.subr.mxu0 0.0
  %740 = vmatpush1.msra.mxu0 0.0
  %741 = vmatprep.subr.mxu0 0.0
  %742 = vmatpush1.msra.mxu0 0.0
  %743 = vmatprep.subr.mxu0 0.0
  %744 = vmatpush1.msra.mxu0 0.0
  %745 = vmatprep.subr.mxu0 0.0
  %746 = vmatpush1.msra.mxu0 0.0
  %747 = vmatprep.subr.mxu0 0.0
  %748 = vmatpush1.msra.mxu0 0.0
  %749 = vmatprep.subr.mxu0 0.0
  %750 = vmatpush1.msra.mxu0 %v26
  %751 = vmatprep.subr.mxu0 0.0
  %752 = vmatpush1.msra.mxu0 %v25
  %753 = vmatprep.subr.mxu0 0.0
  %754 = vmatpush1.msra.mxu0 %v24
  %755 = vmatprep.subr.mxu0 0.0
  %756 = vmatpush1.msra.mxu0 %v23
  %757 = vmatprep.subr.mxu0 0.0
  %758 = vmatpush2.msra.mxu0 0.0
  %759 = vmatprep.subr.mxu0 0.0
  %760 = vmatpush2.msra.mxu0 0.0
  %761 = vmatprep.subr.mxu0 0.0
  %762 = vmatpush2.msra.mxu0 0.0
  %763 = vmatprep.subr.mxu0 0.0
  %764 = vmatpush2.msra.mxu0 0.0
  %765 = vmatprep.subr.mxu0 0.0
  %766 = vmatpush2.msra.mxu0 0.0
  %767 = vmatprep.subr.mxu0 0.0
  %768 = vmatpush2.msra.mxu0 0.0
  %769 = vmatprep.subr.mxu0 0.0
  %770 = vmatpush2.msra.mxu0 0.0
  %771 = vmatprep.subr.mxu0 0.0
  %772 = vmatpush2.msra.mxu0 0.0
  %773 = vmatprep.subr.mxu0 0.0
  %774 = vmatpush2.msra.mxu0 0.0
  %775 = vmatprep.subr.mxu0 0.0
  %776 = vmatpush2.msra.mxu0 0.0
  %777 = vmatprep.subr.mxu0 0.0
  %778 = vmatpush2.msra.mxu0 0.0
  %779 = vmatprep.subr.mxu0 0.0
  %780 = vmatpush2.msra.mxu0 0.0
  %781 = vmatprep.subr.mxu0 0.0
  %782 = vmatpush2.msra.mxu0 0.0
  %783 = vmatprep.subr.mxu0 0.0
  %784 = vmatpush2.msra.mxu0 0.0
  %785 = vmatprep.subr.mxu0 0.0
  %786 = vmatpush2.msra.mxu0 0.0
  %787 = vmatprep.subr.mxu0 0.0
  %788 = vmatpush2.msra.mxu0 0.0
  %789 = vmatprep.mubr.f32.mxu0 0.0
  %790 = vmatmul.mubr.f32.gmra.mxu0 %v723
  %v791 = vpop.f32.mrf.mxu0
  %v792 = vadd.f32 0.0, %v791
  %v793 = vpop.f32.mrf.mxu0
  %794 = vdwg.mxu0
  %v795 = vadd.f32 %v334, %v792
  %v796 = vtanh.pop %v795
  %v798 = vsel %vm128, %v796, 0
  %800 = vmatprep.subr.mxu0 0.0
  %801 = vmatpush1.msra.mxu0 0.0
  %802 = vmatprep.subr.mxu0 0.0
  %803 = vmatpush1.msra.mxu0 0.0
  %804 = vmatprep.subr.mxu0 0.0
  %805 = vmatpush1.msra.mxu0 0.0
  %806 = vmatprep.subr.mxu0 0.0
  %807 = vmatpush1.msra.mxu0 0.0
  %808 = vmatprep.subr.mxu0 0.0
  %809 = vmatpush1.msra.mxu0 0.0
  %810 = vmatprep.subr.mxu0 0.0
  %811 = vmatpush1.msra.mxu0 0.0
  %812 = vmatprep.subr.mxu0 0.0
  %813 = vmatpush1.msra.mxu0 0.0
  %814 = vmatprep.subr.mxu0 0.0
  %815 = vmatpush1.msra.mxu0 0.0
  %816 = vmatprep.subr.mxu0 0.0
  %817 = vmatpush1.msra.mxu0 0.0
  %818 = vmatprep.subr.mxu0 0.0
  %819 = vmatpush1.msra.mxu0 0.0
  %820 = vmatprep.subr.mxu0 0.0
  %821 = vmatpush1.msra.mxu0 0.0
  %822 = vmatprep.subr.mxu0 0.0
  %823 = vmatpush1.msra.mxu0 0.0
  %824 = vmatprep.subr.mxu0 0.0
  %825 = vmatpush1.msra.mxu0 %v26
  %826 = vmatprep.subr.mxu0 0.0
  %827 = vmatpush1.msra.mxu0 %v25
  %828 = vmatprep.subr.mxu0 0.0
  %829 = vmatpush1.msra.mxu0 %v24
  %830 = vmatprep.subr.mxu0 0.0
  %831 = vmatpush1.msra.mxu0 %v23
  %832 = vmatprep.subr.mxu0 0.0
  %833 = vmatpush2.msra.mxu0 0.0
  %834 = vmatprep.subr.mxu0 0.0
  %835 = vmatpush2.msra.mxu0 0.0
  %836 = vmatprep.subr.mxu0 0.0
  %837 = vmatpush2.msra.mxu0 0.0
  %838 = vmatprep.subr.mxu0 0.0
  %839 = vmatpush2.msra.mxu0 0.0
  %840 = vmatprep.subr.mxu0 0.0
  %841 = vmatpush2.msra.mxu0 0.0
  %842 = vmatprep.subr.mxu0 0.0
  %843 = vmatpush2.msra.mxu0 0.0
  %844 = vmatprep.subr.mxu0 0.0
  %845 = vmatpush2.msra.mxu0 0.0
  %846 = vmatprep.subr.mxu0 0.0
  %847 = vmatpush2.msra.mxu0 0.0
  %848 = vmatprep.subr.mxu0 0.0
  %849 = vmatpush2.msra.mxu0 0.0
  %850 = vmatprep.subr.mxu0 0.0
  %851 = vmatpush2.msra.mxu0 0.0
  %852 = vmatprep.subr.mxu0 0.0
  %853 = vmatpush2.msra.mxu0 0.0
  %854 = vmatprep.subr.mxu0 0.0
  %855 = vmatpush2.msra.mxu0 0.0
  %856 = vmatprep.subr.mxu0 0.0
  %857 = vmatpush2.msra.mxu0 0.0
  %858 = vmatprep.subr.mxu0 0.0
  %859 = vmatpush2.msra.mxu0 0.0
  %860 = vmatprep.subr.mxu0 0.0
  %861 = vmatpush2.msra.mxu0 0.0
  %862 = vmatprep.subr.mxu0 0.0
  %863 = vmatpush2.msra.mxu0 0.0
  %864 = vmatprep.mubr.f32.mxu0 0.0
  %865 = vmatmul.mubr.f32.gmra.mxu0 %v798
  %v866 = vpop.f32.mrf.mxu0
  %v867 = vadd.f32 0.0, %v866
  %v868 = vpop.f32.mrf.mxu0
  %869 = vdwg.mxu0
  %v870 = vadd.f32 %v339, %v867
  %v871 = vtanh.pop %v870
  %v873 = vsel %vm128, %v871, 0
  %875 = vmatprep.subr.mxu0 0.0
  %876 = vmatpush1.msra.mxu0 0.0
  %877 = vmatprep.subr.mxu0 0.0
  %878 = vmatpush1.msra.mxu0 0.0
  %879 = vmatprep.subr.mxu0 0.0
  %880 = vmatpush1.msra.mxu0 0.0
  %881 = vmatprep.subr.mxu0 0.0
  %882 = vmatpush1.msra.mxu0 0.0
  %883 = vmatprep.subr.mxu0 0.0
  %884 = vmatpush1.msra.mxu0 0.0
  %885 = vmatprep.subr.mxu0 0.0
  %886 = vmatpush1.msra.mxu0 0.0
  %887 = vmatprep.subr.mxu0 0.0
  %888 = vmatpush1.msra.mxu0 0.0
  %889 = vmatprep.subr.mxu0 0.0
  %890 = vmatpush1.msra.mxu0 0.0
  %891 = vmatprep.subr.mxu0 0.0
  %892 = vmatpush1.msra.mxu0 0.0
  %893 = vmatprep.subr.mxu0 0.0
  %894 = vmatpush1.msra.mxu0 0.0
  %895 = vmatprep.subr.mxu0 0.0
  %896 = vmatpush1.msra.mxu0 0.0
  %897 = vmatprep.subr.mxu0 0.0
  %898 = vmatpush1.msra.mxu0 0.0
  %899 = vmatprep.subr.mxu0 0.0
  %900 = vmatpush1.msra.mxu0 %v26
  %901 = vmatprep.subr.mxu0 0.0
  %902 = vmatpush1.msra.mxu0 %v25
  %903 = vmatprep.subr.mxu0 0.0
  %904 = vmatpush1.msra.mxu0 %v24
  %905 = vmatprep.subr.mxu0 0.0
  %906 = vmatpush1.msra.mxu0 %v23
  %907 = vmatprep.subr.mxu0 0.0
  %908 = vmatpush2.msra.mxu0 0.0
  %909 = vmatprep.subr.mxu0 0.0
  %910 = vmatpush2.msra.mxu0 0.0
  %911 = vmatprep.subr.mxu0 0.0
  %912 = vmatpush2.msra.mxu0 0.0
  %913 = vmatprep.subr.mxu0 0.0
  %914 = vmatpush2.msra.mxu0 0.0
  %915 = vmatprep.subr.mxu0 0.0
  %916 = vmatpush2.msra.mxu0 0.0
  %917 = vmatprep.subr.mxu0 0.0
  %918 = vmatpush2.msra.mxu0 0.0
  %919 = vmatprep.subr.mxu0 0.0
  %920 = vmatpush2.msra.mxu0 0.0
  %921 = vmatprep.subr.mxu0 0.0
  %922 = vmatpush2.msra.mxu0 0.0
  %923 = vmatprep.subr.mxu0 0.0
  %924 = vmatpush2.msra.mxu0 0.0
  %925 = vmatprep.subr.mxu0 0.0
  %926 = vmatpush2.msra.mxu0 0.0
  %927 = vmatprep.subr.mxu0 0.0
  %928 = vmatpush2.msra.mxu0 0.0
  %929 = vmatprep.subr.mxu0 0.0
  %930 = vmatpush2.msra.mxu0 0.0
  %931 = vmatprep.subr.mxu0 0.0
  %932 = vmatpush2.msra.mxu0 0.0
  %933 = vmatprep.subr.mxu0 0.0
  %934 = vmatpush2.msra.mxu0 0.0
  %935 = vmatprep.subr.mxu0 0.0
  %936 = vmatpush2.msra.mxu0 0.0
  %937 = vmatprep.subr.mxu0 0.0
  %938 = vmatpush2.msra.mxu0 0.0
  %939 = vmatprep.mubr.f32.mxu0 0.0
  %940 = vmatmul.mubr.f32.gmra.mxu0 %v873
  %v941 = vpop.f32.mrf.mxu0
  %v942 = vadd.f32 0.0, %v941
  %v943 = vpop.f32.mrf.mxu0
  %944 = vdwg.mxu0
  %v945 = vadd.f32 %v344, %v942
  %v946 = vtanh.pop %v945
  %v947 = vlaneseq
  %v948 = vshrl.u32 %v947, 7
  %v949 = vsub.s32 0, %v948
  %v950 = vrot.slane %v34, %v949
  %v952 = vsel %vm128, %v946, 0
  %954 = vmatprep.subr.mxu0 0.0
  %955 = vmatpush1.msra.mxu0 0.0
  %956 = vmatprep.subr.mxu0 0.0
  %957 = vmatpush1.msra.mxu0 0.0
  %958 = vmatprep.subr.mxu0 0.0
  %959 = vmatpush1.msra.mxu0 0.0
  %960 = vmatprep.subr.mxu0 0.0
  %961 = vmatpush1.msra.mxu0 0.0
  %962 = vmatprep.subr.mxu0 0.0
  %963 = vmatpush1.msra.mxu0 0.0
  %964 = vmatprep.subr.mxu0 0.0
  %965 = vmatpush1.msra.mxu0 0.0
  %966 = vmatprep.subr.mxu0 0.0
  %967 = vmatpush1.msra.mxu0 0.0
  %968 = vmatprep.subr.mxu0 0.0
  %969 = vmatpush1.msra.mxu0 0.0
  %970 = vmatprep.subr.mxu0 0.0
  %971 = vmatpush1.msra.mxu0 0.0
  %972 = vmatprep.subr.mxu0 0.0
  %973 = vmatpush1.msra.mxu0 0.0
  %974 = vmatprep.subr.mxu0 0.0
  %975 = vmatpush1.msra.mxu0 0.0
  %976 = vmatprep.subr.mxu0 0.0
  %977 = vmatpush1.msra.mxu0 0.0
  %978 = vmatprep.subr.mxu0 0.0
  %979 = vmatpush1.msra.mxu0 %v30
  %980 = vmatprep.subr.mxu0 0.0
  %981 = vmatpush1.msra.mxu0 %v29
  %982 = vmatprep.subr.mxu0 0.0
  %983 = vmatpush1.msra.mxu0 %v28
  %984 = vmatprep.subr.mxu0 0.0
  %985 = vmatpush1.msra.mxu0 %v27
  %986 = vmatprep.subr.mxu0 0.0
  %987 = vmatpush2.msra.mxu0 0.0
  %988 = vmatprep.subr.mxu0 0.0
  %989 = vmatpush2.msra.mxu0 0.0
  %990 = vmatprep.subr.mxu0 0.0
  %991 = vmatpush2.msra.mxu0 0.0
  %992 = vmatprep.subr.mxu0 0.0
  %993 = vmatpush2.msra.mxu0 0.0
  %994 = vmatprep.subr.mxu0 0.0
  %995 = vmatpush2.msra.mxu0 0.0
  %996 = vmatprep.subr.mxu0 0.0
  %997 = vmatpush2.msra.mxu0 0.0
  %998 = vmatprep.subr.mxu0 0.0
  %999 = vmatpush2.msra.mxu0 0.0
  %1000 = vmatprep.subr.mxu0 0.0
  %1001 = vmatpush2.msra.mxu0 0.0
  %1002 = vmatprep.subr.mxu0 0.0
  %1003 = vmatpush2.msra.mxu0 0.0
  %1004 = vmatprep.subr.mxu0 0.0
  %1005 = vmatpush2.msra.mxu0 0.0
  %1006 = vmatprep.subr.mxu0 0.0
  %1007 = vmatpush2.msra.mxu0 0.0
  %1008 = vmatprep.subr.mxu0 0.0
  %1009 = vmatpush2.msra.mxu0 0.0
  %1010 = vmatprep.subr.mxu0 0.0
  %1011 = vmatpush2.msra.mxu0 0.0
  %1012 = vmatprep.subr.mxu0 0.0
  %1013 = vmatpush2.msra.mxu0 0.0
  %1014 = vmatprep.subr.mxu0 0.0
  %1015 = vmatpush2.msra.mxu0 0.0
  %1016 = vmatprep.subr.mxu0 0.0
  %1017 = vmatpush2.msra.mxu0 0.0
  %1018 = vmatprep.mubr.f32.mxu0 0.0
  %1019 = vmatmul.mubr.f32.gmra.mxu0 %v423
  %v1020 = vpop.f32.mrf.mxu0
  %v1021 = vadd.f32 %v950, %v1020
  %v1022 = vpop.f32.mrf.mxu0
  %1023 = vmatprep.mubr.f32.mxu0 0.0
  %1024 = vmatmul.mubr.f32.gmra.mxu0 %v498
  %v1025 = vpop.f32.mrf.mxu0
  %v1026 = vadd.f32 %v950, %v1025
  %v1027 = vpop.f32.mrf.mxu0
  %1028 = vmatprep.mubr.f32.mxu0 0.0
  %1029 = vmatmul.mubr.f32.gmra.mxu0 %v573
  %v1030 = vpop.f32.mrf.mxu0
  %v1031 = vadd.f32 %v950, %v1030
  %v1032 = vpop.f32.mrf.mxu0
  %1033 = vmatprep.mubr.f32.mxu0 0.0
  %1034 = vmatmul.mubr.f32.gmra.mxu0 %v648
  %v1035 = vpop.f32.mrf.mxu0
  %v1036 = vadd.f32 %v950, %v1035
  %v1037 = vpop.f32.mrf.mxu0
  %1038 = vmatprep.mubr.f32.mxu0 0.0
  %1039 = vmatmul.mubr.f32.gmra.mxu0 %v723
  %v1040 = vpop.f32.mrf.mxu0
  %v1041 = vadd.f32 %v950, %v1040
  %v1042 = vpop.f32.mrf.mxu0
  %1043 = vmatprep.mubr.f32.mxu0 0.0
  %1044 = vmatmul.mubr.f32.gmra.mxu0 %v798
  %v1045 = vpop.f32.mrf.mxu0
  %v1046 = vadd.f32 %v950, %v1045
  %v1047 = vpop.f32.mrf.mxu0
  %1048 = vmatprep.mubr.f32.mxu0 0.0
  %1049 = vmatmul.mubr.f32.gmra.mxu0 %v873
  %v1050 = vpop.f32.mrf.mxu0
  %v1051 = vadd.f32 %v950, %v1050
  %v1052 = vpop.f32.mrf.mxu0
  %1053 = vmatprep.mubr.f32.mxu0 0.0
  %1054 = vmatmul.mubr.f32.gmra.mxu0 %v952
  %v1055 = vpop.f32.mrf.mxu0
  %v1056 = vadd.f32 %v950, %v1055
  %v1057 = vpop.f32.mrf.mxu0
  %1058 = vdwg.mxu0
  %v1059 = vmax.f32 %v1021, 0.0
  %v1060 = vmax.f32 %v1026, 0.0
  %v1061 = vmax.f32 %v1031, 0.0
  %v1062 = vmax.f32 %v1036, 0.0
  %v1063 = vmax.f32 %v1041, 0.0
  %v1064 = vmax.f32 %v1046, 0.0
  %v1065 = vmax.f32 %v1051, 0.0
  %v1066 = vmax.f32 %v1056, 0.0
  %v1067 = vlaneseq
  %v1068 = vshrl.u32 %v1067, 7
  %v1069 = vsub.s32 0, %v1068
  %v1070 = vrot.slane %v39, %v1069
  %v1072 = vsel %vm128, %v1059, 0
  %v1075 = vsel %vm128, %v1060, 0
  %v1078 = vsel %vm128, %v1061, 0
  %v1081 = vsel %vm128, %v1062, 0
  %v1084 = vsel %vm128, %v1063, 0
  %v1087 = vsel %vm128, %v1064, 0
  %v1090 = vsel %vm128, %v1065, 0
  %v1093 = vsel %vm128, %v1066, 0
  %1095 = vmatprep.subr.mxu0 0.0
  %1096 = vmatpush1.msra.mxu0 0.0
  %1097 = vmatprep.subr.mxu0 0.0
  %1098 = vmatpush1.msra.mxu0 0.0
  %1099 = vmatprep.subr.mxu0 0.0
  %1100 = vmatpush1.msra.mxu0 0.0
  %1101 = vmatprep.subr.mxu0 0.0
  %1102 = vmatpush1.msra.mxu0 0.0
  %1103 = vmatprep.subr.mxu0 0.0
  %1104 = vmatpush1.msra.mxu0 0.0
  %1105 = vmatprep.subr.mxu0 0.0
  %1106 = vmatpush1.msra.mxu0 0.0
  %1107 = vmatprep.subr.mxu0 0.0
  %1108 = vmatpush1.msra.mxu0 0.0
  %1109 = vmatprep.subr.mxu0 0.0
  %1110 = vmatpush1.msra.mxu0 0.0
  %1111 = vmatprep.subr.mxu0 0.0
  %1112 = vmatpush1.msra.mxu0 0.0
  %1113 = vmatprep.subr.mxu0 0.0
  %1114 = vmatpush1.msra.mxu0 0.0
  %1115 = vmatprep.subr.mxu0 0.0
  %1116 = vmatpush1.msra.mxu0 0.0
  %1117 = vmatprep.subr.mxu0 0.0
  %1118 = vmatpush1.msra.mxu0 0.0
  %1119 = vmatprep.subr.mxu0 0.0
  %1120 = vmatpush1.msra.mxu0 %v38
  %1121 = vmatprep.subr.mxu0 0.0
  %1122 = vmatpush1.msra.mxu0 %v37
  %1123 = vmatprep.subr.mxu0 0.0
  %1124 = vmatpush1.msra.mxu0 %v36
  %1125 = vmatprep.subr.mxu0 0.0
  %1126 = vmatpush1.msra.mxu0 %v35
  %1127 = vmatprep.subr.mxu0 0.0
  %1128 = vmatpush2.msra.mxu0 0.0
  %1129 = vmatprep.subr.mxu0 0.0
  %1130 = vmatpush2.msra.mxu0 0.0
  %1131 = vmatprep.subr.mxu0 0.0
  %1132 = vmatpush2.msra.mxu0 0.0
  %1133 = vmatprep.subr.mxu0 0.0
  %1134 = vmatpush2.msra.mxu0 0.0
  %1135 = vmatprep.subr.mxu0 0.0
  %1136 = vmatpush2.msra.mxu0 0.0
  %1137 = vmatprep.subr.mxu0 0.0
  %1138 = vmatpush2.msra.mxu0 0.0
  %1139 = vmatprep.subr.mxu0 0.0
  %1140 = vmatpush2.msra.mxu0 0.0
  %1141 = vmatprep.subr.mxu0 0.0
  %1142 = vmatpush2.msra.mxu0 0.0
  %1143 = vmatprep.subr.mxu0 0.0
  %1144 = vmatpush2.msra.mxu0 0.0
  %1145 = vmatprep.subr.mxu0 0.0
  %1146 = vmatpush2.msra.mxu0 0.0
  %1147 = vmatprep.subr.mxu0 0.0
  %1148 = vmatpush2.msra.mxu0 0.0
  %1149 = vmatprep.subr.mxu0 0.0
  %1150 = vmatpush2.msra.mxu0 0.0
  %1151 = vmatprep.subr.mxu0 0.0
  %1152 = vmatpush2.msra.mxu0 0.0
  %1153 = vmatprep.subr.mxu0 0.0
  %1154 = vmatpush2.msra.mxu0 0.0
  %1155 = vmatprep.subr.mxu0 0.0
  %1156 = vmatpush2.msra.mxu0 0.0
  %1157 = vmatprep.subr.mxu0 0.0
  %1158 = vmatpush2.msra.mxu0 0.0
  %1159 = vmatprep.mubr.f32.mxu0 0.0
  %1160 = vmatmul.mubr.f32.gmra.mxu0 %v1072
  %v1161 = vpop.f32.mrf.mxu0
  %v1162 = vadd.f32 %v1070, %v1161
  %v1163 = vpop.f32.mrf.mxu0
  %1164 = vmatprep.mubr.f32.mxu0 0.0
  %1165 = vmatmul.mubr.f32.gmra.mxu0 %v1075
  %v1166 = vpop.f32.mrf.mxu0
  %v1167 = vadd.f32 %v1070, %v1166
  %v1168 = vpop.f32.mrf.mxu0
  %1169 = vmatprep.mubr.f32.mxu0 0.0
  %1170 = vmatmul.mubr.f32.gmra.mxu0 %v1078
  %v1171 = vpop.f32.mrf.mxu0
  %v1172 = vadd.f32 %v1070, %v1171
  %v1173 = vpop.f32.mrf.mxu0
  %1174 = vmatprep.mubr.f32.mxu0 0.0
  %1175 = vmatmul.mubr.f32.gmra.mxu0 %v1081
  %v1176 = vpop.f32.mrf.mxu0
  %v1177 = vadd.f32 %v1070, %v1176
  %v1178 = vpop.f32.mrf.mxu0
  %1179 = vmatprep.mubr.f32.mxu0 0.0
  %1180 = vmatmul.mubr.f32.gmra.mxu0 %v1084
  %v1181 = vpop.f32.mrf.mxu0
  %v1182 = vadd.f32 %v1070, %v1181
  %v1183 = vpop.f32.mrf.mxu0
  %1184 = vmatprep.mubr.f32.mxu0 0.0
  %1185 = vmatmul.mubr.f32.gmra.mxu0 %v1087
  %v1186 = vpop.f32.mrf.mxu0
  %v1187 = vadd.f32 %v1070, %v1186
  %v1188 = vpop.f32.mrf.mxu0
  %1189 = vmatprep.mubr.f32.mxu0 0.0
  %1190 = vmatmul.mubr.f32.gmra.mxu0 %v1090
  %v1191 = vpop.f32.mrf.mxu0
  %v1192 = vadd.f32 %v1070, %v1191
  %v1193 = vpop.f32.mrf.mxu0
  %1194 = vmatprep.mubr.f32.mxu0 0.0
  %1195 = vmatmul.mubr.f32.gmra.mxu0 %v1093
  %v1196 = vpop.f32.mrf.mxu0
  %v1197 = vadd.f32 %v1070, %v1196
  %v1198 = vpop.f32.mrf.mxu0
  %1199 = vdwg.mxu0
  %1200 = vst [vmem:[%s4] sm:$0xff] %v1162
  %1201 = vst [vmem:[%s4 + $0x8] sm:$0xff] %v1167
  %1202 = vst [vmem:[%s4 + $0x10] sm:$0xff] %v1172
  %1203 = vst [vmem:[%s4 + $0x18] sm:$0xff] %v1177
  %1204 = vst [vmem:[%s4 + $0x20] sm:$0xff] %v1182
  %1205 = vst [vmem:[%s4 + $0x28] sm:$0xff] %v1187
  %1206 = vst [vmem:[%s4 + $0x30] sm:$0xff] %v1192
  %1207 = vst [vmem:[%s4 + $0x38] sm:$0xff] %v1197
  // Predicated region
  $region18: #{_drnn_forward.1} parent=0 // pred_check
    _
  $region19: #{_drnn_forward.1} parent=0 // pred_check_branch
    %1209 = sbr.rel (0) target = $region21
  $region20: #{_drnn_forward.1} parent=0 // pred_region
    _
  $region21: #{_drnn_forward.1} parent=0 // pred_fallthru
    _
  // Predicated region
  $region22: #{_drnn_forward.1} parent=0 // pred_check
    _
  $region23: #{_drnn_forward.1} parent=0 // pred_check_branch
    %1211 = sbr.rel (0) target = $region25
  $region24: #{_drnn_forward.1} parent=0 // pred_region
    _
  $region25: #{_drnn_forward.1} parent=0 // pred_fallthru
    _

</llo_original>
